<compile_context>
chip_gen: v7x
topology: tpu7x:2x2x1
jax: 0.10.0
libtpu: 0.0.40
codegen_flags: <defaults>
</compile_context>

<pallas_src>
import functools

import jax
import jax.numpy as jnp
from jax.experimental import pallas as pl
from jax.experimental.pallas import tpu as pltpu

LANE = 128
NEG_BIG = -1e30  # "minus infinity" stand-in that stays finite in f32 arithmetic

# Tiling / VMEM budgets (conservative across v5e / v6e / v7x).
_A_DESIRED_TM = 1024                   # row tile target
_A_DESIRED_TK = 2048                   # reduction (A-column) tile target
_X_RESIDENT_BYTES = 4 * 1024 * 1024    # keep X / h1 fully VMEM-resident below this
_VMEM_LIMIT_BYTES = 32 * 1024 * 1024   # <= v7x default scoped (32 MiB of 64 MiB physical),
                                       # raises v5e/v6e above their 16/32 MiB defaults.


def _round_up(x, m):
    return ((x + m - 1) // m) * m


def _pad2(a, rows, cols, dtype=None):
    dtype = a.dtype if dtype is None else dtype
    out = jnp.zeros((rows, cols), dtype)
    return out.at[: a.shape[0], : a.shape[1]].set(a.astype(dtype))


def _choose_tiles(n):
    """Row tile (parallel) and A-column tile (reduction) plus padded N.

    Keeps the double-buffered bf16 A-tile working set <= 8 MiB while making each
    grid step long enough to hide the fixed per-step overhead; guarantees >= 2 row
    tiles whenever n > 8 so v7x's two TensorCores both get work."""
    if n <= 2 * _A_DESIRED_TM:
        tile_m = max(8, _round_up(-(-n // 2), 8))   # two row tiles
        n_pad = _round_up(n, tile_m)
        tile_k = n_pad                              # whole reduction in one k step
    else:
        tile_m = _A_DESIRED_TM
        tile_k = _A_DESIRED_TK
        n_pad = _round_up(n, _A_DESIRED_TK)         # divisible by both tile_m and tile_k
    return tile_m, tile_k, n_pad


def _normalized_adjacency(edge_index, n):
    """Dense D^-1/2 (A + I) D^-1/2 (GCNConv's gcn_norm), f32, for the reference."""
    src, dst = edge_index[0], edge_index[1]
    a = jnp.zeros((n, n), jnp.float32).at[dst, src].add(1.0)
    a = a + jnp.eye(n, dtype=jnp.float32)
    d = jax.lax.rsqrt(jnp.sum(a, axis=1))
    return a * d[:, None] * d[None, :]


def _normalized_adjacency_padded_bf16(edge_index, n, n_pad):
    """Same normalization, built directly at padded shape and cast to bf16 in one fused
    expression (avoids the extra O(N^2) f32 pad+cast round trip)."""
    src, dst = edge_index[0], edge_index[1]
    a = jnp.zeros((n_pad, n_pad), jnp.float32).at[dst, src].add(1.0)
    a = a.at[jnp.arange(n), jnp.arange(n)].add(1.0)          # self loops on real nodes only
    deg = jnp.sum(a, axis=1)
    d = jnp.where(deg > 0.0, jax.lax.rsqrt(deg), 0.0)        # padded rows/cols stay exactly 0
    return (a * d[:, None] * d[None, :]).astype(jnp.bfloat16)


# --------------------------------------------------------------------------------------
# Kernel A1: GCN layer 1    h1 = relu((A @ X) @ W1 + b1)        (bf16 in, bf16 out)
# grid = (row tiles "parallel", A-column reduction "arbitrary"), f32 VMEM accumulator.
# --------------------------------------------------------------------------------------
def _gcn_layer1_kernel(a_ref, x_ref, w_ref, b_ref, out_ref, acc_ref, *, tile_k, resident_x):
    k = pl.program_id(1)

    @pl.when(k == 0)
    def _():
        acc_ref[...] = jnp.zeros_like(acc_ref)

    if resident_x:
        start = pl.multiple_of(k * tile_k, tile_k)
        x_blk = x_ref[pl.ds(start, tile_k), :]
    else:
        x_blk = x_ref[...]
    # bf16 x bf16 -> f32 accumulate on the MXU
    acc_ref[...] += jnp.dot(a_ref[...], x_blk, preferred_element_type=jnp.float32)

    @pl.when(k == pl.num_programs(1) - 1)
    def _():
        h = jnp.dot(acc_ref[...], w_ref[...], preferred_element_type=jnp.float32) + b_ref[...]
        out_ref[...] = jnp.maximum(h, 0.0).astype(out_ref.dtype)


def _gcn_layer1(a_bf, x_bf, w, b, *, tile_m, tile_k, resident_x):
    n_pad = a_bf.shape[0]
    e_pad = w.shape[0]
    grid = (n_pad // tile_m, n_pad // tile_k)
    x_spec = (pl.BlockSpec((n_pad, e_pad), lambda i, k: (0, 0)) if resident_x
              else pl.BlockSpec((tile_k, e_pad), lambda i, k: (k, 0)))
    x_reads = 1 if resident_x else (n_pad // tile_m)
    flops = 2 * n_pad * n_pad * e_pad + 2 * n_pad * e_pad * e_pad
    bytes_accessed = int(a_bf.size * 2 + x_reads * x_bf.size * 2 + w.size * 4
                         + n_pad * e_pad * 2)
    return pl.pallas_call(
        functools.partial(_gcn_layer1_kernel, tile_k=tile_k, resident_x=resident_x),
        out_shape=jax.ShapeDtypeStruct((n_pad, e_pad), jnp.bfloat16),
        grid_spec=pltpu.PrefetchScalarGridSpec(
            num_scalar_prefetch=0,
            grid=grid,
            in_specs=[
                pl.BlockSpec((tile_m, tile_k), lambda i, k: (i, k)),   # A tile (bf16)
                x_spec,                                                # X (bf16, resident if small)
                pl.BlockSpec((e_pad, e_pad), lambda i, k: (0, 0)),     # W1 (f32, resident)
                pl.BlockSpec((1, e_pad), lambda i, k: (0, 0)),         # b1
            ],
            out_specs=pl.BlockSpec((tile_m, e_pad), lambda i, k: (i, 0)),
            scratch_shapes=[pltpu.VMEM((tile_m, e_pad), jnp.float32)],
        ),
        compiler_params=pltpu.CompilerParams(
            dimension_semantics=("parallel", "arbitrary"),
            vmem_limit_bytes=_VMEM_LIMIT_BYTES),
        cost_estimate=pl.CostEstimate(flops=flops, transcendentals=0,
                                      bytes_accessed=bytes_accessed),
    )(a_bf, x_bf, w, b)


# --------------------------------------------------------------------------------------
# Kernel A2: GCN layer 2 + fused MLP head
#   h2 = (A @ h1) @ W2 + b2                          (aggregation identical to layer 1)
#   finalize (last k): t = relu(h2 @ LW1 + lb1); logit = t @ LW2_rep + lb2   (lane-dense)
#   masked_fill(mask==0, -1e9); emit logit slab + per-row-tile per-graph (max, sum-exp).
# h2 never leaves VMEM; the head kernel from v1 is gone.
# --------------------------------------------------------------------------------------
def _gcn_layer2_head_kernel(a_ref, h_ref, w_ref, b_ref, lw1_ref, lb1_ref,
                            lw2_ref, lb2_ref, batch_ref, mask_ref,
                            logit_ref, stats_ref, acc_ref, *, tile_k, resident_x):
    k = pl.program_id(1)

    @pl.when(k == 0)
    def _():
        acc_ref[...] = jnp.zeros_like(acc_ref)

    if resident_x:
        start = pl.multiple_of(k * tile_k, tile_k)
        h_blk = h_ref[pl.ds(start, tile_k), :]
    else:
        h_blk = h_ref[...]
    acc_ref[...] += jnp.dot(a_ref[...], h_blk, preferred_element_type=jnp.float32)

    @pl.when(k == pl.num_programs(1) - 1)
    def _():
        h2 = jnp.dot(acc_ref[...], w_ref[...], preferred_element_type=jnp.float32) + b_ref[...]
        t = jnp.dot(h2, lw1_ref[...], preferred_element_type=jnp.float32) + lb1_ref[...]
        t = jnp.maximum(t, 0.0)
        # lw2 is the (E,1) head column replicated across all 128 lanes -> every lane of `lg`
        # carries the node's logit (lane-dense output, no width-1 MXU result).
        lg = jnp.dot(t, lw2_ref[...], preferred_element_type=jnp.float32) + lb2_ref[...]
        lg = jnp.where(mask_ref[...] == 0.0, jnp.float32(-1e9), lg)     # masked_fill
        logit_ref[...] = lg

        # one-hot graph membership rebuilt in-kernel from the int32 batch-id column
        gid = jax.lax.broadcasted_iota(jnp.int32, lg.shape, 1)          # (TM, G_pad)
        seg = batch_ref[...] == gid                                     # (TM, G_pad) bool
        member = jnp.where(seg, lg, NEG_BIG)
        pmax = jnp.max(member, axis=0, keepdims=True)                   # (1, G_pad)
        pexp = jnp.where(seg, jnp.exp(lg - pmax), 0.0)                  # selected lanes finite
        psum = jnp.sum(pexp, axis=0, keepdims=True)                     # (1, G_pad)

        row = jax.lax.broadcasted_iota(jnp.int32, stats_ref.shape, 0)   # (8, G_pad)
        stats_ref[...] = jnp.where(row == 0, pmax, jnp.where(row == 1, psum, 0.0))


def _gcn_layer2_head(a_bf, h_bf, w, b, lw1, lb1, lw2_rep, lb2_rep, batch_col, mask_col,
                     *, tile_m, tile_k, resident_x):
    n_pad = a_bf.shape[0]
    e_pad = w.shape[0]
    g_pad = lw2_rep.shape[1]
    n_tiles_m = n_pad // tile_m
    grid = (n_tiles_m, n_pad // tile_k)
    h_spec = (pl.BlockSpec((n_pad, e_pad), lambda i, k: (0, 0)) if resident_x
              else pl.BlockSpec((tile_k, e_pad), lambda i, k: (k, 0)))
    h_reads = 1 if resident_x else n_tiles_m
    flops = (2 * n_pad * n_pad * e_pad + 4 * n_pad * e_pad * e_pad
             + 2 * n_pad * e_pad * g_pad)
    bytes_accessed = int(a_bf.size * 2 + h_reads * h_bf.size * 2
                         + (w.size + lw1.size + lw2_rep.size) * 4 + n_pad * g_pad * 4)
    return pl.pallas_call(
        functools.partial(_gcn_layer2_head_kernel, tile_k=tile_k, resident_x=resident_x),
        out_shape=(jax.ShapeDtypeStruct((n_pad, g_pad), jnp.float32),        # logit slab
                   jax.ShapeDtypeStruct((n_tiles_m * 8, g_pad), jnp.float32)),  # per-tile stats
        grid_spec=pltpu.PrefetchScalarGridSpec(
            num_scalar_prefetch=0,
            grid=grid,
            in_specs=[
                pl.BlockSpec((tile_m, tile_k), lambda i, k: (i, k)),   # A tile (bf16)
                h_spec,                                                # h1 (bf16)
                pl.BlockSpec((e_pad, e_pad), lambda i, k: (0, 0)),     # W2
                pl.BlockSpec((1, e_pad), lambda i, k: (0, 0)),         # b2
                pl.BlockSpec((e_pad, e_pad), lambda i, k: (0, 0)),     # lin1 W
                pl.BlockSpec((1, e_pad), lambda i, k: (0, 0)),         # lin1 b
                pl.BlockSpec((e_pad, g_pad), lambda i, k: (0, 0)),     # lin2 W (lane-replicated)
                pl.BlockSpec((1, g_pad), lambda i, k: (0, 0)),         # lin2 b (lane-replicated)
                pl.BlockSpec((tile_m, 1), lambda i, k: (i, 0)),        # batch-id column (i32)
                pl.BlockSpec((tile_m, 1), lambda i, k: (i, 0)),        # node mask column (f32)
            ],
            out_specs=[pl.BlockSpec((tile_m, g_pad), lambda i, k: (i, 0)),
                       pl.BlockSpec((8, g_pad), lambda i, k: (i, 0))],
            scratch_shapes=[pltpu.VMEM((tile_m, e_pad), jnp.float32)],
        ),
        compiler_params=pltpu.CompilerParams(
            dimension_semantics=("parallel", "arbitrary"),
            vmem_limit_bytes=_VMEM_LIMIT_BYTES),
        cost_estimate=pl.CostEstimate(flops=flops, transcendentals=n_pad * g_pad,
                                      bytes_accessed=bytes_accessed),
    )(a_bf, h_bf, w, b, lw1, lb1, lw2_rep, lb2_rep, batch_col, mask_col)


# --------------------------------------------------------------------------------------
# Kernel C: per-graph softmax normalization
#   out[n, g] = exp(logit_n - m_g) / l_g  if batch[n] == g else 0
# stats are the globally merged (and clamped) per-graph max / sum-exp from the wrapper,
# so no lane ever sees inf/NaN even for padded graph columns.
# --------------------------------------------------------------------------------------
def _normalize_kernel(logit_ref, batch_ref, stats_ref, out_ref):
    m = stats_ref[0:1, :]                                    # (1, G_pad) per-graph max
    l = stats_ref[1:2, :]                                    # (1, G_pad) per-graph sum(exp)
    inv = pl.reciprocal(l, approx=True)                      # EUP, frees VPU slots
    gid = jax.lax.broadcasted_iota(jnp.int32, out_ref.shape, 1)
    seg = batch_ref[...] == gid
    e = jnp.where(seg, jnp.exp(logit_ref[...] - m), 0.0)
    out_ref[...] = e * inv


def _normalize(logit_slab, batch_col, stats, *, tile_m):
    n_pad, g_pad = logit_slab.shape
    grid = (n_pad // tile_m,)
    return pl.pallas_call(
        _normalize_kernel,
        out_shape=jax.ShapeDtypeStruct((n_pad, g_pad), jnp.float32),
        grid_spec=pltpu.PrefetchScalarGridSpec(
            num_scalar_prefetch=0,
            grid=grid,
            in_specs=[
                pl.BlockSpec((tile_m, g_pad), lambda i: (i, 0)),
                pl.BlockSpec((tile_m, 1), lambda i: (i, 0)),
                pl.BlockSpec((8, g_pad), lambda i: (0, 0)),
            ],
            out_specs=pl.BlockSpec((tile_m, g_pad), lambda i: (i, 0)),
        ),
        compiler_params=pltpu.CompilerParams(dimension_semantics=("parallel",)),
    )(logit_slab, batch_col, stats)


# --------------------------------------------------------------------------------------
# Wrapper
# --------------------------------------------------------------------------------------
def graph_conv_classifier_forward(x, edge_index, batch, mask, params, num_graphs):
    """x: (N,E) f32, edge_index: (2,num_edges) i32, batch: (N,) i32, mask: (N,) f32.
    num_graphs is a static Python int (avoids a device sync / recompile per value)."""
    N, E = x.shape
    assert num_graphs <= LANE, "graph axis limited to 128 lanes (see TODO above)"

    e_pad = _round_up(E, LANE)
    g_pad = LANE
    tile_m, tile_k, n_pad = _choose_tiles(N)
    resident_x = (n_pad * e_pad * 2) <= _X_RESIDENT_BYTES   # hold X / h1 fully in VMEM

    # ---- glue: normalized adjacency built padded + bf16 (dominant HBM operand) ----
    a_p = _normalized_adjacency_padded_bf16(edge_index, N, n_pad)
    x_p = _pad2(x, n_pad, e_pad, jnp.bfloat16)

    # ---- glue: zero-padded weights (f32) ----
    w1_p = _pad2(params["gcn_w1"], e_pad, e_pad)
    b1_p = _pad2(params["gcn_b1"], 1, e_pad)
    w2_p = _pad2(params["gcn_w2"], e_pad, e_pad)
    b2_p = _pad2(params["gcn_b2"], 1, e_pad)
    lw1_p = _pad2(params["lin1_w"], e_pad, e_pad)
    lb1_p = _pad2(params["lin1_b"], 1, e_pad)
    # Final (E,1) head column replicated across 128 lanes -> lane-dense logits in-kernel.
    lw2_rep = jnp.broadcast_to(_pad2(params["lin2_w"], e_pad, 1), (e_pad, g_pad))
    lb2_rep = jnp.broadcast_to(params["lin2_b"].reshape(1, 1).astype(jnp.float32), (1, g_pad))

    # ---- glue: tiny per-node columns (replace the old (N,128) one-hot slab) ----
    batch_col = jnp.full((n_pad, 1), -1, jnp.int32).at[:N, 0].set(batch.astype(jnp.int32))
    mask_col = jnp.zeros((n_pad, 1), jnp.float32).at[:N, 0].set(mask.astype(jnp.float32))

    # ---- kernels ----
    h1 = _gcn_layer1(a_p, x_p, w1_p, b1_p,
                     tile_m=tile_m, tile_k=tile_k, resident_x=resident_x)
    logit_slab, stats_parts = _gcn_layer2_head(
        a_p, h1, w2_p, b2_p, lw1_p, lb1_p, lw2_rep, lb2_rep, batch_col, mask_col,
        tile_m=tile_m, tile_k=tile_k, resident_x=resident_x)

    # ---- tiny cross-row-tile logsumexp merge (plain JAX on (T, 128) arrays) ----
    n_tiles_m = n_pad // tile_m
    parts = stats_parts.reshape(n_tiles_m, 8, g_pad)
    pmax = parts[:, 0, :]                                    # (T, G_pad)
    psum = parts[:, 1, :]
    m = jnp.max(pmax, axis=0, keepdims=True)                 # (1, G_pad)
    l = jnp.sum(psum * jnp.exp(pmax - m), axis=0, keepdims=True)
    has_members = l > 0.0                                    # clamp padded / empty graphs so
    m = jnp.where(has_members, m, 0.0)                       # kernel C never sees inf/NaN
    l = jnp.where(has_members, l, 1.0)
    stats = jnp.zeros((8, g_pad), jnp.float32).at[0:1, :].set(m).at[1:2, :].set(l)

    out_slab = _normalize(logit_slab, batch_col, stats, tile_m=tile_m)

    # Each valid row has exactly one nonzero column (its graph) -> reduce to (N,).
    return jnp.sum(out_slab[:N, :num_graphs], axis=1)


# --------------------------------------------------------------------------------------
# Pure-JAX reference (mirrors the kernel's bf16 rounding of A / aggregation inputs so
# the comparison isolates kernel-structure bugs rather than documented precision choices)
# --------------------------------------------------------------------------------------
def reference_forward(x, edge_index, batch, mask, params, num_graphs):
    N, E = x.shape
    a = _normalized_adjacency(edge_index, N)
    a_bf = a.astype(jnp.bfloat16).astype(jnp.float32)
    x_bf = x.astype(jnp.bfloat16).astype(jnp.float32)

    h = jnp.maximum((a_bf @ x_bf) @ params["gcn_w1"] + params["gcn_b1"], 0.0)
    h = h.astype(jnp.bfloat16).astype(jnp.float32)          # layer-1 activations travel bf16
    h = (a_bf @ h) @ params["gcn_w2"] + params["gcn_b2"]

    h1 = jnp.maximum(h @ params["lin1_w"] + params["lin1_b"], 0.0)
    logits = (h1 @ params["lin2_w"] + params["lin2_b"])[:, 0]
    logits = jnp.where(mask == 0.0, -1e9, logits)

    out = jnp.zeros_like(logits)
    for g in range(num_graphs):
        sel = batch == g
        m = jnp.max(jnp.where(sel, logits, -jnp.inf))
        e = jnp.where(sel, jnp.exp(logits - m), 0.0)
        out = jnp.where(sel, e / jnp.sum(e), out)
    return out


if __name__ == "__main__":
    # small shapes: 2 graphs of 8 nodes each, embed_dim=32, num_layers=2
    N, E, num_graphs = 16, 32, 2
    key = jax.random.PRNGKey(0)
    ks = jax.random.split(key, 10)

    x = jax.random.normal(ks[0], (N, E), jnp.float32)

    # ring edges inside each graph (both directions)
    edges = []
    nodes_per_graph = N // num_graphs
    for g in range(num_graphs):
        base = g * nodes_per_graph
        for i in range(nodes_per_graph):
            a_, b_ = base + i, base + (i + 1) % nodes_per_graph
            edges.append((a_, b_))
            edges.append((b_, a_))
    edge_index = jnp.array(edges, dtype=jnp.int32).T          # (2, num_edges)

    batch = jnp.repeat(jnp.arange(num_graphs, dtype=jnp.int32), nodes_per_graph)  # (N,)
    mask = jnp.ones((N,), jnp.float32).at[jnp.array([3, 11])].set(0.0)

    params = {
        "gcn_w1": jax.random.normal(ks[1], (E, E), jnp.float32) * 0.1,
        "gcn_b1": jax.random.normal(ks[2], (1, E), jnp.float32) * 0.1,
        "gcn_w2": jax.random.normal(ks[3], (E, E), jnp.float32) * 0.1,
        "gcn_b2": jax.random.normal(ks[4], (1, E), jnp.float32) * 0.1,
        "lin1_w": jax.random.normal(ks[5], (E, E), jnp.float32) * 0.1,
        "lin1_b": jax.random.normal(ks[6], (1, E), jnp.float32) * 0.1,
        "lin2_w": jax.random.normal(ks[7], (E, 1), jnp.float32) * 0.1,
        "lin2_b": jax.random.normal(ks[8], (1, 1), jnp.float32) * 0.1,
    }

    out = graph_conv_classifier_forward(x, edge_index, batch, mask, params, num_graphs)
    out = jax.block_until_ready(out)

    ref = reference_forward(x, edge_index, batch, mask, params, num_graphs)
    assert out.shape == (N,)
    max_err = float(jnp.max(jnp.abs(out - ref)))
    # tolerance covers bf16 aggregation rounding-order effects + approx reciprocal
    assert jnp.allclose(out, ref, rtol=2e-3, atol=2e-3), (max_err, out, ref)

    print("KERNEL_OK")
</pallas_src>

<mosaic_0001>
module attributes {stable_mosaic.version = 11 : i64} {
  func.func @_gcn_layer1_kernel(%arg0: i32, %arg1: i32, %arg2: memref<8x16xbf16, #tpu.memory_space<vmem>>, %arg3: memref<16x128xbf16, #tpu.memory_space<vmem>>, %arg4: memref<128x128xf32, #tpu.memory_space<vmem>>, %arg5: memref<1x128xf32, #tpu.memory_space<vmem>>, %arg6: memref<8x128xbf16, #tpu.memory_space<vmem>>, %arg7: memref<8x128xf32, #tpu.memory_space<vmem>>) attributes {dimension_semantics = [#tpu.dimension_semantics<parallel>, #tpu.dimension_semantics<arbitrary>], iteration_bounds = array<i64: 2, 1>, scalar_prefetch = 0 : i64, scratch_operands = 1 : i64, tpu.core_type = #tpu.core_type<tc>, window_params = [{transform_indices = @transform_0, window_bounds = array<i64: 8, 16>}, {pipeline_mode = #tpu.pipeline_mode<synchronous>, transform_indices = @transform_1, window_bounds = array<i64: 16, 128>}, {pipeline_mode = #tpu.pipeline_mode<synchronous>, transform_indices = @transform_2, window_bounds = array<i64: 128, 128>}, {pipeline_mode = #tpu.pipeline_mode<synchronous>, transform_indices = @transform_3, window_bounds = array<i64: 1, 128>}, {transform_indices = @transform_4, window_bounds = array<i64: 8, 128>}]} {
    %c0_i32 = arith.constant 0 : i32
    %0 = arith.cmpi eq, %arg1, %c0_i32 : i32
    %1 = arith.extui %0 : i1 to i32
    %c0_i32_0 = arith.constant 0 : i32
    %2 = arith.cmpi ne, %1, %c0_i32_0 : i32
    scf.if %2 {
      %cst_9 = arith.constant 0.000000e+00 : f32
      %15 = vector.broadcast %cst_9 : f32 to vector<8x128xf32>
      %c0_10 = arith.constant 0 : index
      %c0_11 = arith.constant 0 : index
      %16 = vector.load %arg7[%c0_10, %c0_11] : memref<8x128xf32, #tpu.memory_space<vmem>>, vector<8x128xf32>
      tpu.vector_store %arg7[%c0_10, %c0_11], %15 {strides = array<i32>} : memref<8x128xf32, #tpu.memory_space<vmem>>, vector<8x128xf32>,
    } else {
    }
    %c16_i32 = arith.constant 16 : i32
    %3 = arith.muli %arg1, %c16_i32 : i32
    %4 = tpu.assume_multiple %3, 16 : i32
    %5 = arith.index_cast %4 : i32 to index
    %c0 = arith.constant 0 : index
    %6 = vector.load %arg3[%5, %c0] : memref<16x128xbf16, #tpu.memory_space<vmem>>, vector<16x128xbf16>
    %c0_1 = arith.constant 0 : index
    %c0_2 = arith.constant 0 : index
    %7 = vector.load %arg7[%c0_1, %c0_2] : memref<8x128xf32, #tpu.memory_space<vmem>>, vector<8x128xf32>
    %c0_3 = arith.constant 0 : index
    %c0_4 = arith.constant 0 : index
    %8 = vector.load %arg2[%c0_3, %c0_4] : memref<8x16xbf16, #tpu.memory_space<vmem>>, vector<8x16xbf16>
    %cst = arith.constant dense<0.000000e+00> : vector<8x128xf32>
    %9 = tpu.matmul %8, %6, %cst {dimension_numbers = #tpu.dot_dimension_numbers<[1], [0], [0], [1], [0, 0, 1, 1], [], []>} : vector<8x16xbf16>, vector<16x128xbf16>, vector<8x128xf32> -> vector<8x128xf32>
    %10 = arith.addf %7, %9 : vector<8x128xf32>
    %c0_5 = arith.constant 0 : index
    %c0_6 = arith.constant 0 : index
    %11 = vector.load %arg7[%c0_5, %c0_6] : memref<8x128xf32, #tpu.memory_space<vmem>>, vector<8x128xf32>
    tpu.vector_store %arg7[%c0_5, %c0_6], %10 {strides = array<i32>} : memref<8x128xf32, #tpu.memory_space<vmem>>, vector<8x128xf32>,
    %c0_i32_7 = arith.constant 0 : i32
    %12 = arith.cmpi eq, %arg1, %c0_i32_7 : i32
    %13 = arith.extui %12 : i1 to i32
    %c0_i32_8 = arith.constant 0 : i32
    %14 = arith.cmpi ne, %13, %c0_i32_8 : i32
    scf.if %14 {
      %c0_9 = arith.constant 0 : index
      %c0_10 = arith.constant 0 : index
      %15 = vector.load %arg7[%c0_9, %c0_10] : memref<8x128xf32, #tpu.memory_space<vmem>>, vector<8x128xf32>
      %c0_11 = arith.constant 0 : index
      %c0_12 = arith.constant 0 : index
      %16 = vector.load %arg4[%c0_11, %c0_12] : memref<128x128xf32, #tpu.memory_space<vmem>>, vector<128x128xf32>
      %cst_13 = arith.constant dense<0.000000e+00> : vector<8x128xf32>
      %17 = tpu.matmul %15, %16, %cst_13 {dimension_numbers = #tpu.dot_dimension_numbers<[1], [0], [0], [1], [0, 0, 1, 1], [], []>} : vector<8x128xf32>, vector<128x128xf32>, vector<8x128xf32> -> vector<8x128xf32>
      %c0_14 = arith.constant 0 : index
      %c0_15 = arith.constant 0 : index
      %18 = vector.load %arg5[%c0_14, %c0_15] : memref<1x128xf32, #tpu.memory_space<vmem>>, vector<1x128xf32>
      %19 = vector.broadcast %18 : vector<1x128xf32> to vector<8x128xf32>
      %20 = arith.addf %17, %19 : vector<8x128xf32>
      %cst_16 = arith.constant 0.000000e+00 : f32
      %21 = vector.broadcast %cst_16 : f32 to vector<8x128xf32>
      %22 = arith.maximumf %20, %21 : vector<8x128xf32>
      %23 = arith.truncf %22 : vector<8x128xf32> to vector<8x128xbf16>
      %c0_17 = arith.constant 0 : index
      %c0_18 = arith.constant 0 : index
      %24 = vector.load %arg6[%c0_17, %c0_18] : memref<8x128xbf16, #tpu.memory_space<vmem>>, vector<8x128xbf16>
      tpu.vector_store %arg6[%c0_17, %c0_18], %23 {strides = array<i32>} : memref<8x128xbf16, #tpu.memory_space<vmem>>, vector<8x128xbf16>,
    } else {
    }
    return
  }
  func.func @transform_0(%arg0: i32, %arg1: i32) -> (i32, i32) {
    %c0_i32 = arith.constant 0 : i32
    return %arg0, %arg1 : i32, i32
  }
  func.func @transform_1(%arg0: i32, %arg1: i32) -> (i32, i32) {
    %c0_i32 = arith.constant 0 : i32
    %c0_i32_0 = arith.constant 0 : i32
    %c0_i32_1 = arith.constant 0 : i32
    return %c0_i32, %c0_i32_0 : i32, i32
  }
  func.func @transform_2(%arg0: i32, %arg1: i32) -> (i32, i32) {
    %c0_i32 = arith.constant 0 : i32
    %c0_i32_0 = arith.constant 0 : i32
    %c0_i32_1 = arith.constant 0 : i32
    return %c0_i32, %c0_i32_0 : i32, i32
  }
  func.func @transform_3(%arg0: i32, %arg1: i32) -> (i32, i32) {
    %c0_i32 = arith.constant 0 : i32
    %c0_i32_0 = arith.constant 0 : i32
    %c0_i32_1 = arith.constant 0 : i32
    return %c0_i32, %c0_i32_0 : i32, i32
  }
  func.func @transform_4(%arg0: i32, %arg1: i32) -> (i32, i32) {
    %c0_i32 = arith.constant 0 : i32
    %c0_i32_0 = arith.constant 0 : i32
    return %arg0, %c0_i32 : i32, i32
  }
}

</mosaic_0001>

<llo_original>
// kernel: tpu_custom_call.1
$region0: #{tpu_custom_call.1}
  #allocation0 [shape = 'u32[]', space=smem, size = 0x4, offset = 0x4, fixed_abs, tag = 'smem constant byte address 0x4 - core index']
  #allocation1 [shape = 'u32[144,128]{1,0:T(1,128)}', space=vmem, size = 0x12000, scoped, tag = 'internal scratch']
  #allocation2 [shape = 'f32[8,128]{1,0:T(8,128)}', space=vmem, size = 0x1000, scoped, tag = 'scratch operand']
  %s0 = inlined_call_operand.hbm [shape: bf16[16,16], index: 0, kind: input, shape index: {}]
  %s1 = inlined_call_operand.hbm [shape: bf16[16,128], index: 1, kind: input, shape index: {}]
  %s2 = inlined_call_operand.hbm [shape: f32[128,128], index: 2, kind: input, shape index: {}]
  %s3 = inlined_call_operand.vmem [shape: f32[1,128], index: 3, kind: input, shape index: {}]
  %s4 = inlined_call_operand.hbm [shape: bf16[16,128], index: 4, kind: output, shape index: {}]
  %s5 = sld [smem:[#allocation0]]
  $region69: #{tpu_custom_call.1} parent=0
    _
  %s7 = ssub.s32 1, %s5
  %s8 = scalar_select 0, %s7, %s5
  $region1: #{tpu_custom_call.1} parent=0
    #allocation3 [shape = 'u8[4096]{0}', space=vmem, size = 0x1000, scoped, tag = 'input window, operand 0']
    #allocation4 [shape = 's32[2]{0}', space=sflag, size = 0x8, scoped, tag = 'scoped memory for tpu_custom_call.1']
    #allocation5 [shape = 's32[2]{0}', space=sflag, size = 0x8, scoped, tag = 'scoped memory for tpu_custom_call.1']
    #allocation6 [shape = 'u8[4096]{0}', space=vmem, size = 0x1000, scoped, tag = 'input window, operand 1, single buffered']
    #allocation7 [shape = 's32[1]{0}', space=sflag, size = 0x4, scoped, tag = 'scoped memory for tpu_custom_call.1']
    #allocation8 [shape = 'u8[65536]{0}', space=vmem, size = 0x10000, scoped, tag = 'input window, operand 2, single buffered']
    #allocation9 [shape = 'u8[4096]{0}', space=vmem, size = 0x1000, scoped, tag = 'output window, operand 0']
    %9 = vsyncpa [#allocation4], 0
    %s10 = scalar_lea.sflag [#allocation4], 1
    %11 = vsyncpa %s10, 0
    %12 = vsyncpa [#allocation7], 0
    %13 = vsyncpa [#allocation5], 0
    %s14 = scalar_lea.sflag [#allocation5], 1
    %15 = vsyncpa %s14, 0
    loop: start=0, step=1, limit=4
    $region2: #{tpu_custom_call.1} parent=1 // loop_pre_header
      _
    $region3: #{tpu_custom_call.1} parent=1 // loop_header
      %s17 = sphi 0, %s21
      %p18 = scmp.ge.s32.totalorder %s17, 4
      %s24 = sphi 0, %s36
      %s25 = sphi 0, %s32
      %s26 = sphi 0, %s24
      %s27 = sphi 0, %s25
      %s28 = sphi 0, %s26
      %s29 = sphi 0, %s27
      %s41 = sphi 0, %s43
      %s44 = sphi 0, %s41
      %s45 = sphi 0, %s44
      %s61 = sphi 0, %s45
      %s65 = sphi 0, %s65
      %s67 = sphi 0, %s65
      %s68 = sphi 0, %s67
      %s82 = sphi 0, %s68
      %s86 = sphi 0, %s86
      %s88 = sphi 0, %s86
      %s89 = sphi 0, %s88
      %s103 = sphi 0, %s89
      %s107 = sphi 0, %s107
      %s109 = sphi 0, %s107
      %s110 = sphi 0, %s109
      %s124 = sphi 0, %s110
      %s130 = sphi 0, %s132
      %s133 = sphi 0, %s130
      %s134 = sphi 0, %s133
      %s150 = sphi 0, %s134
    $region4: #{tpu_custom_call.1} parent=1 // loop_header_branch
      %20 = sbr.rel (%p18) target = $region8
    $region5: #{tpu_custom_call.1} parent=1 // loop_body
      %s22 = ssub.s32 %s17, 1
      %s23 = ssub.s32 %s17, 2
      %s30 = sadd.s32 1, %s25
      %p31 = scmp.ge.s32.totalorder %s30, 1
      %s32 = scalar_select %p31, 0, %s30
      %s33 = sadd.s32 1, %s24
      %s34 = scalar_select %p31, %s33, %s24
      %p35 = scmp.ge.s32.totalorder %s34, 2
      %s36 = scalar_select %p35, 0, %s34
      %s37 = ssub.s32 %s24, %s36
      %s38 = ssub.s32 %s25, %s32
      %s39 = sor.u32 %s37, %s38
      %p40 = scmp.eq.s32.totalorder %s39, 0
      %s42 = sadd.s32 %s41, 1
      %s43 = scalar_select %p40, %s41, %s42
      %p46 = pneg %p40
      %p47 = scmp.eq.s32.totalorder %s17, 1
      %p48 = por %p46, %p47
      %p49 = scmp.ne.s32.totalorder %s41, %s44
      %p50 = scmp.eq.s32.totalorder %s17, 0
      %p51 = por %p49, %p50
      %p52 = scmp.ne.s32.totalorder %s41, %s44
      %p53 = scmp.eq.s32.totalorder %s22, 1
      %p54 = por %p52, %p53
      %p55 = scmp.ne.s32.totalorder %s44, %s45
      %p56 = scmp.eq.s32.totalorder %s22, 0
      %p57 = por %p55, %p56
      %p58 = scmp.ne.s32.totalorder %s44, %s45
      %p59 = scmp.eq.s32.totalorder %s23, 1
      %p60 = por %p58, %p59
      %p62 = scmp.ne.s32.totalorder %s45, %s61
      %p63 = scmp.eq.s32.totalorder %s23, 0
      %p64 = por %p62, %p63
      %s66 = sadd.s32 %s65, 1
      %p69 = scmp.eq.s32.totalorder %s17, 1
      %p70 = scmp.ne.s32.totalorder %s65, %s67
      %p71 = scmp.eq.s32.totalorder %s17, 0
      %p72 = por %p70, %p71
      %p73 = scmp.ne.s32.totalorder %s65, %s67
      %p74 = scmp.eq.s32.totalorder %s22, 1
      %p75 = por %p73, %p74
      %p76 = scmp.ne.s32.totalorder %s67, %s68
      %p77 = scmp.eq.s32.totalorder %s22, 0
      %p78 = por %p76, %p77
      %p79 = scmp.ne.s32.totalorder %s67, %s68
      %p80 = scmp.eq.s32.totalorder %s23, 1
      %p81 = por %p79, %p80
      %p83 = scmp.ne.s32.totalorder %s68, %s82
      %p84 = scmp.eq.s32.totalorder %s23, 0
      %p85 = por %p83, %p84
      %s87 = sadd.s32 %s86, 1
      %p90 = scmp.eq.s32.totalorder %s17, 1
      %p91 = scmp.ne.s32.totalorder %s86, %s88
      %p92 = scmp.eq.s32.totalorder %s17, 0
      %p93 = por %p91, %p92
      %p94 = scmp.ne.s32.totalorder %s86, %s88
      %p95 = scmp.eq.s32.totalorder %s22, 1
      %p96 = por %p94, %p95
      %p97 = scmp.ne.s32.totalorder %s88, %s89
      %p98 = scmp.eq.s32.totalorder %s22, 0
      %p99 = por %p97, %p98
      %p100 = scmp.ne.s32.totalorder %s88, %s89
      %p101 = scmp.eq.s32.totalorder %s23, 1
      %p102 = por %p100, %p101
      %p104 = scmp.ne.s32.totalorder %s89, %s103
      %p105 = scmp.eq.s32.totalorder %s23, 0
      %p106 = por %p104, %p105
      %s108 = sadd.s32 %s107, 1
      %p111 = scmp.eq.s32.totalorder %s17, 1
      %p112 = scmp.ne.s32.totalorder %s107, %s109
      %p113 = scmp.eq.s32.totalorder %s17, 0
      %p114 = por %p112, %p113
      %p115 = scmp.ne.s32.totalorder %s107, %s109
      %p116 = scmp.eq.s32.totalorder %s22, 1
      %p117 = por %p115, %p116
      %p118 = scmp.ne.s32.totalorder %s109, %s110
      %p119 = scmp.eq.s32.totalorder %s22, 0
      %p120 = por %p118, %p119
      %p121 = scmp.ne.s32.totalorder %s109, %s110
      %p122 = scmp.eq.s32.totalorder %s23, 1
      %p123 = por %p121, %p122
      %p125 = scmp.ne.s32.totalorder %s110, %s124
      %p126 = scmp.eq.s32.totalorder %s23, 0
      %p127 = por %p125, %p126
      %s128 = ssub.s32 %s24, %s36
      %p129 = scmp.eq.s32.totalorder %s128, 0
      %s131 = sadd.s32 %s130, 1
      %s132 = scalar_select %p129, %s130, %s131
      %p135 = pneg %p129
      %p136 = scmp.eq.s32.totalorder %s17, 1
      %p137 = por %p135, %p136
      %p138 = scmp.ne.s32.totalorder %s130, %s133
      %p139 = scmp.eq.s32.totalorder %s17, 0
      %p140 = por %p138, %p139
      %p141 = scmp.ne.s32.totalorder %s130, %s133
      %p142 = scmp.eq.s32.totalorder %s22, 1
      %p143 = por %p141, %p142
      %p144 = scmp.ne.s32.totalorder %s133, %s134
      %p145 = scmp.eq.s32.totalorder %s22, 0
      %p146 = por %p144, %p145
      %p147 = scmp.ne.s32.totalorder %s133, %s134
      %p148 = scmp.eq.s32.totalorder %s23, 1
      %p149 = por %p147, %p148
      %p151 = scmp.ne.s32.totalorder %s134, %s150
      %p152 = scmp.eq.s32.totalorder %s23, 0
      %p153 = por %p151, %p152
      %p154 = scmp.le.s32.totalorder 1, %s17
      %p155 = scmp.lt.s32.totalorder %s17, 3
      %p156 = pnand %p154, %p155
      %p157 = pneg %p156
      // Predicated region
      $region9: #{tpu_custom_call.1} parent=5 // pred_check
        _
      $region10: #{tpu_custom_call.1} parent=5 // pred_check_branch
        %159 = sbr.rel (%p156) target = $region12
      $region11: #{tpu_custom_call.1} parent=5 // pred_region
        %s160 = ssub.s32 %s17, 1
        // Predicated region
        $region13: #{tpu_custom_call.1} parent=11 // pred_check
          %p161 = pneg %p78
        $region14: #{tpu_custom_call.1} parent=11 // pred_check_branch
          %163 = sbr.rel (%p161) target = $region16
        $region15: #{tpu_custom_call.1} parent=11 // pred_region
          %s165 = ssub.s32 128, 128
          %166 = vsyncadd [#allocation7], %s165
          %s167 = sshll.u32 [#allocation6], 4
          %s168 = int_to_ptr.vmem [resolvable:$true] %s167
          %173 = dma.hbm_to_vmem [thread:$0]  %s1, 128, %s168, [#allocation7], 64, 64, 4
        $region16: #{tpu_custom_call.1} parent=11 // pred_fallthru
          _
        // Predicated region
        $region17: #{tpu_custom_call.1} parent=11 // pred_check
          %p174 = pneg %p99
        $region18: #{tpu_custom_call.1} parent=11 // pred_check_branch
          %176 = sbr.rel (%p174) target = $region20
        $region19: #{tpu_custom_call.1} parent=11 // pred_region
          %s178 = ssub.s32 2048, 2048
          %179 = vsyncadd [#allocation7], %s178
          %s180 = sshll.u32 [#allocation8], 4
          %s181 = int_to_ptr.vmem [resolvable:$true] %s180
          %186 = dma.hbm_to_vmem [thread:$0]  %s2, 2048, %s181, [#allocation7], 128, 128, 8
        $region20: #{tpu_custom_call.1} parent=11 // pred_fallthru
          _
        // Predicated region
        $region21: #{tpu_custom_call.1} parent=11 // pred_check
          %p187 = pneg %p120
        $region22: #{tpu_custom_call.1} parent=11 // pred_check_branch
          %189 = sbr.rel (%p187) target = $region24
        $region23: #{tpu_custom_call.1} parent=11 // pred_region
          _
        $region24: #{tpu_custom_call.1} parent=11 // pred_fallthru
          _
      $region12: #{tpu_custom_call.1} parent=5 // pred_fallthru
        _
      %p190 = scmp.lt.s32.totalorder %s17, 2
      // Predicated region
      $region25: #{tpu_custom_call.1} parent=5 // pred_check
        %p191 = pneg %p190
      $region26: #{tpu_custom_call.1} parent=5 // pred_check_branch
        %193 = sbr.rel (%p191) target = $region28
      $region27: #{tpu_custom_call.1} parent=5 // pred_region
        // Predicated region
        $region29: #{tpu_custom_call.1} parent=27 // pred_check
          %p194 = pneg %p51
        $region30: #{tpu_custom_call.1} parent=27 // pred_check_branch
          %196 = sbr.rel (%p194) target = $region32
        $region31: #{tpu_custom_call.1} parent=27 // pred_region
          %s197 = sand.u32 %s41, 1
          %s198 = scalar_lea.sflag [#allocation4], %s197
          %s199 = sand.u32 %s41, 1
          %s200 = smul.addr %s199, 4
          %s201 = scalar_lea.vmem [#allocation3], %s200
          %s203 = ssub.s32 64, 64
          %204 = vsyncadd %s198, %s203
          %s205 = sadd.s32 %s25, %s24
          %s206 = smul.addr %s205, 64
          %s207 = scalar_lea.hbm %s0, %s206
          %s209 = sshll.u32 %s201, 4
          %s210 = int_to_ptr.vmem [resolvable:$true] %s209
          %212 = dma.hbm_to_vmem [thread:$0]  %s207, 64, %s210, %s198
        $region32: #{tpu_custom_call.1} parent=27 // pred_fallthru
          _
      $region28: #{tpu_custom_call.1} parent=5 // pred_fallthru
        _
      %p213 = scmp.le.s32.totalorder 1, %s17
      %p214 = scmp.lt.s32.totalorder %s17, 3
      %p215 = pnand %p213, %p214
      %p216 = pneg %p215
      // Predicated region
      $region33: #{tpu_custom_call.1} parent=5 // pred_check
        _
      $region34: #{tpu_custom_call.1} parent=5 // pred_check_branch
        %218 = sbr.rel (%p215) target = $region36
      $region35: #{tpu_custom_call.1} parent=5 // pred_region
        %s219 = ssub.s32 %s17, 1
        %s220 = sand.u32 %s44, 1
        %s221 = scalar_lea.sflag [#allocation4], %s220
        %s222 = sand.u32 %s44, 1
        %s223 = smul.addr %s222, 4
        %s224 = scalar_lea.vmem [#allocation3], %s223
        // Predicated region
        $region37: #{tpu_custom_call.1} parent=35 // pred_check
          %p225 = pneg %p57
        $region38: #{tpu_custom_call.1} parent=35 // pred_check_branch
          %227 = sbr.rel (%p225) target = $region40
        $region39: #{tpu_custom_call.1} parent=35 // pred_region
          %228 = dma.done %s221, 64
        $region40: #{tpu_custom_call.1} parent=35 // pred_fallthru
          _
        // Predicated region
        $region41: #{tpu_custom_call.1} parent=35 // pred_check
          %p229 = pneg %p78
        $region42: #{tpu_custom_call.1} parent=35 // pred_check_branch
          %231 = sbr.rel (%p229) target = $region44
        $region43: #{tpu_custom_call.1} parent=35 // pred_region
          %232 = dma.done [#allocation7], 128
        $region44: #{tpu_custom_call.1} parent=35 // pred_fallthru
          _
        // Predicated region
        $region45: #{tpu_custom_call.1} parent=35 // pred_check
          %p233 = pneg %p99
        $region46: #{tpu_custom_call.1} parent=35 // pred_check_branch
          %235 = sbr.rel (%p233) target = $region48
        $region47: #{tpu_custom_call.1} parent=35 // pred_region
          %236 = dma.done [#allocation7], 2048
        $region48: #{tpu_custom_call.1} parent=35 // pred_fallthru
          _
        %s237 = sand.u32 %s44, 1
        %s238 = scalar_lea.sflag [#allocation4], %s237
        %s239 = sand.u32 %s44, 1
        %s240 = smul.addr %s239, 4
        %s241 = scalar_lea.vmem [#allocation3], %s240
        %p242 = pneg %p57
        %p243 = pneg %p54
        %p244 = pneg %p78
        %p245 = pneg %p75
        %p246 = pneg %p99
        %p247 = pneg %p96
        %p248 = pneg %p120
        %p249 = pneg %p117
        %p250 = pneg %p146
        %p251 = pneg %p143
        %s252 = sand.u32 %s133, 1
        %s253 = scalar_lea.sflag [#allocation5], %s252
        %s254 = sand.u32 %s133, 1
        %s255 = smul.addr %s254, 4
        %s256 = scalar_lea.vmem [#allocation9], %s255
        %p258 = scmp.eq.s32.totalorder %s27, 0
        // Predicated region
        $region49: #{tpu_custom_call.1} parent=35 // pred_check
          %p259 = pneg %p258
        $region50: #{tpu_custom_call.1} parent=35 // pred_check_branch
          %261 = sbr.rel (%p259) target = $region52
        $region51: #{tpu_custom_call.1} parent=35 // pred_region
          %262 = vst [vmem:[#allocation2] sm:$0xff] 0.0
        $region52: #{tpu_custom_call.1} parent=35 // pred_fallthru
          _
        %s263 = smul.u32 %s27, 16
        %s264 = sshra.s32 %s263, 3
        %s265 = sand.u32 %s263, 7
        %s266 = smul.addr %s264, 4
        %s267 = scalar_lea.vmem [#allocation6], %s266
        %v268 = vld [vmem:[%s267] sm:$0xf]
        %v269 = vld [vmem:[%s267 + $0x4] sm:$0xf]
        %v270 = vld [vmem:[#allocation2] sm:$0xff]
        %v271 = vld [vmem:[%s224] sm:$0xf]
        %v274 = vunpack.c.l.b16 %v268
        %v275 = vunpack.c.l.b16 %v269
        %v276 = vpack.c.b16 %v275, %v274
        %vm278 = vcmask 130048
        %v280 = vsel %vm278, %v271, 0
        %282 = vmatprep.subr.bf16.mxu0 0
        %283 = vmatpush1.bf16.msra.mxu0 %v276
        %284 = vmatprep.subr.bf16.mxu0 0
        %285 = vmatpush1.bf16.msra.mxu0 0
        %286 = vmatprep.subr.bf16.mxu0 0
        %287 = vmatpush1.bf16.msra.mxu0 0
        %288 = vmatprep.subr.bf16.mxu0 0
        %289 = vmatpush1.bf16.msra.mxu0 0
        %290 = vmatprep.subr.bf16.mxu0 0
        %291 = vmatpush1.bf16.msra.mxu0 0
        %292 = vmatprep.subr.bf16.mxu0 0
        %293 = vmatpush1.bf16.msra.mxu0 0
        %294 = vmatprep.subr.bf16.mxu0 0
        %295 = vmatpush1.bf16.msra.mxu0 0
        %296 = vmatprep.subr.bf16.mxu0 0
        %297 = vmatpush1.bf16.msra.mxu0 0
        %298 = vmatprep.subr.bf16.mxu0 0
        %299 = vmatpush1.bf16.msra.mxu0 0
        %300 = vmatprep.subr.bf16.mxu0 0
        %301 = vmatpush1.bf16.msra.mxu0 0
        %302 = vmatprep.subr.bf16.mxu0 0
        %303 = vmatpush1.bf16.msra.mxu0 0
        %304 = vmatprep.subr.bf16.mxu0 0
        %305 = vmatpush1.bf16.msra.mxu0 0
        %306 = vmatprep.subr.bf16.mxu0 0
        %307 = vmatpush1.bf16.msra.mxu0 0
        %308 = vmatprep.subr.bf16.mxu0 0
        %309 = vmatpush1.bf16.msra.mxu0 0
        %310 = vmatprep.subr.bf16.mxu0 0
        %311 = vmatpush1.bf16.msra.mxu0 0
        %312 = vmatprep.subr.bf16.mxu0 0
        %313 = vmatpush1.bf16.msra.mxu0 0
        %314 = vmatprep.mubr.bf16.mxu0 0
        %315 = vmatmul.mubr.bf16.gmra.mrb[0].mxu0 %v280
        %v316 = vpop.f32.mrb[0].mxu0
        %v317 = vadd.f32 0.0, %v316
        %v318 = vpop.f32.mrb[0].mxu0
        %v319 = vpop.f32.mrb[0].mxu0
        %v320 = vpop.f32.mrb[0].mxu0
        %321 = vdwg.mxu0
        %v322 = vadd.f32 %v270, %v317
        %323 = vst [vmem:[#allocation2] sm:$0xff] %v322
        // Predicated region
        $region53: #{tpu_custom_call.1} parent=35 // pred_check
          %p324 = pneg %p258
        $region54: #{tpu_custom_call.1} parent=35 // pred_check_branch
          %326 = sbr.rel (%p324) target = $region56
        $region55: #{tpu_custom_call.1} parent=35 // pred_region
          %v327 = vld [vmem:[#allocation2] sm:$0xff]
          %v328 = vld [vmem:[#allocation8] sm:$0xff]
          %v329 = vld [vmem:[#allocation8 + $0x8] sm:$0xff]
          %v330 = vld [vmem:[#allocation8 + $0x10] sm:$0xff]
          %v331 = vld [vmem:[#allocation8 + $0x18] sm:$0xff]
          %v332 = vld [vmem:[#allocation8 + $0x20] sm:$0xff]
          %v333 = vld [vmem:[#allocation8 + $0x28] sm:$0xff]
          %v334 = vld [vmem:[#allocation8 + $0x30] sm:$0xff]
          %v335 = vld [vmem:[#allocation8 + $0x38] sm:$0xff]
          %v336 = vld [vmem:[#allocation8 + $0x40] sm:$0xff]
          %v337 = vld [vmem:[#allocation8 + $0x48] sm:$0xff]
          %v338 = vld [vmem:[#allocation8 + $0x50] sm:$0xff]
          %v339 = vld [vmem:[#allocation8 + $0x58] sm:$0xff]
          %v340 = vld [vmem:[#allocation8 + $0x60] sm:$0xff]
          %v341 = vld [vmem:[#allocation8 + $0x68] sm:$0xff]
          %v342 = vld [vmem:[#allocation8 + $0x70] sm:$0xff]
          %v343 = vld [vmem:[#allocation8 + $0x78] sm:$0xff]
          %v344 = vld [vmem:[%s3] sm:$0x1]
          %v346 = vlaneseq
          %v347 = vshrl.u32 %v346, 7
          %v348 = vsub.s32 0, %v347
          %v349 = vrot.slane %v344, %v348
          %351 = vmatprep.subr.mxu0 0.0
          %352 = vmatpush1.msra.mxu0 %v328
          %353 = vmatprep.subr.mxu0 0.0
          %354 = vmatpush1.msra.mxu0 %v329
          %355 = vmatprep.subr.mxu0 0.0
          %356 = vmatpush1.msra.mxu0 %v330
          %357 = vmatprep.subr.mxu0 0.0
          %358 = vmatpush1.msra.mxu0 %v331
          %359 = vmatprep.subr.mxu0 0.0
          %360 = vmatpush1.msra.mxu0 %v332
          %361 = vmatprep.subr.mxu0 0.0
          %362 = vmatpush1.msra.mxu0 %v333
          %363 = vmatprep.subr.mxu0 0.0
          %364 = vmatpush1.msra.mxu0 %v334
          %365 = vmatprep.subr.mxu0 0.0
          %366 = vmatpush1.msra.mxu0 %v335
          %367 = vmatprep.subr.mxu0 0.0
          %368 = vmatpush1.msra.mxu0 %v336
          %369 = vmatprep.subr.mxu0 0.0
          %370 = vmatpush1.msra.mxu0 %v337
          %371 = vmatprep.subr.mxu0 0.0
          %372 = vmatpush1.msra.mxu0 %v338
          %373 = vmatprep.subr.mxu0 0.0
          %374 = vmatpush1.msra.mxu0 %v339
          %375 = vmatprep.subr.mxu0 0.0
          %376 = vmatpush1.msra.mxu0 %v340
          %377 = vmatprep.subr.mxu0 0.0
          %378 = vmatpush1.msra.mxu0 %v341
          %379 = vmatprep.subr.mxu0 0.0
          %380 = vmatpush1.msra.mxu0 %v342
          %381 = vmatprep.subr.mxu0 0.0
          %382 = vmatpush1.msra.mxu0 %v343
          %383 = vmatprep.subr.mxu0 0.0
          %384 = vmatpush1.msra.mxu0 0.0
          %385 = vmatprep.subr.mxu0 0.0
          %386 = vmatpush1.msra.mxu0 0.0
          %387 = vmatprep.subr.mxu0 0.0
          %388 = vmatpush1.msra.mxu0 0.0
          %389 = vmatprep.subr.mxu0 0.0
          %390 = vmatpush1.msra.mxu0 0.0
          %391 = vmatprep.subr.mxu0 0.0
          %392 = vmatpush1.msra.mxu0 0.0
          %393 = vmatprep.subr.mxu0 0.0
          %394 = vmatpush1.msra.mxu0 0.0
          %395 = vmatprep.subr.mxu0 0.0
          %396 = vmatpush1.msra.mxu0 0.0
          %397 = vmatprep.subr.mxu0 0.0
          %398 = vmatpush1.msra.mxu0 0.0
          %399 = vmatprep.subr.mxu0 0.0
          %400 = vmatpush1.msra.mxu0 0.0
          %401 = vmatprep.subr.mxu0 0.0
          %402 = vmatpush1.msra.mxu0 0.0
          %403 = vmatprep.subr.mxu0 0.0
          %404 = vmatpush1.msra.mxu0 0.0
          %405 = vmatprep.subr.mxu0 0.0
          %406 = vmatpush1.msra.mxu0 0.0
          %407 = vmatprep.subr.mxu0 0.0
          %408 = vmatpush1.msra.mxu0 0.0
          %409 = vmatprep.subr.mxu0 0.0
          %410 = vmatpush1.msra.mxu0 0.0
          %411 = vmatprep.subr.mxu0 0.0
          %412 = vmatpush1.msra.mxu0 0.0
          %413 = vmatprep.subr.mxu0 0.0
          %414 = vmatpush1.msra.mxu0 0.0
          %415 = vmatprep.mubr.f32.mxu0 0.0
          %416 = vmatmul.mubr.f32.gmra.mrb[0].mxu0 %v327
          %v417 = vpop.f32.mrb[0].mxu0
          %v418 = vadd.f32 %v349, %v417
          %v419 = vpop.f32.mrb[0].mxu0
          %420 = vdwg.mxu0
          %v421 = vmax.f32 %v418, 0.0
          %v422 = vpack.c.bf16 %v421, %v421
          %423 = vst [vmem:[%s256] sm:$0xf] %v422
        $region56: #{tpu_custom_call.1} parent=35 // pred_fallthru
          _
        %s424 = sand.u32 %s133, 1
        %s425 = scalar_lea.sflag [#allocation5], %s424
        %s426 = sand.u32 %s133, 1
        %s427 = smul.addr %s426, 4
        %s428 = scalar_lea.vmem [#allocation9], %s427
        // Predicated region
        $region57: #{tpu_custom_call.1} parent=35 // pred_check
          %p429 = pneg %p143
        $region58: #{tpu_custom_call.1} parent=35 // pred_check_branch
          %431 = sbr.rel (%p429) target = $region60
        $region59: #{tpu_custom_call.1} parent=35 // pred_region
          %s433 = ssub.s32 64, 64
          %434 = vsyncadd %s425, %s433
          %s435 = smul.addr %s26, 64
          %s436 = scalar_lea.hbm %s4, %s435
          %s438 = sshll.u32 %s428, 4
          %s439 = int_to_ptr.vmem [resolvable:$true] %s438
          %441 = dma.vmem_to_hbm [thread:$0]  %s439, 64, %s436, %s425
        $region60: #{tpu_custom_call.1} parent=35 // pred_fallthru
          _
      $region36: #{tpu_custom_call.1} parent=5 // pred_fallthru
        _
      %p442 = scmp.le.s32.totalorder 2, %s17
      // Predicated region
      $region61: #{tpu_custom_call.1} parent=5 // pred_check
        %p443 = pneg %p442
      $region62: #{tpu_custom_call.1} parent=5 // pred_check_branch
        %445 = sbr.rel (%p443) target = $region64
      $region63: #{tpu_custom_call.1} parent=5 // pred_region
        %s446 = ssub.s32 %s17, 2
        // Predicated region
        $region65: #{tpu_custom_call.1} parent=63 // pred_check
          %p447 = pneg %p149
        $region66: #{tpu_custom_call.1} parent=63 // pred_check_branch
          %449 = sbr.rel (%p447) target = $region68
        $region67: #{tpu_custom_call.1} parent=63 // pred_region
          %s450 = sand.u32 %s134, 1
          %s451 = scalar_lea.sflag [#allocation5], %s450
          %s452 = sand.u32 %s134, 1
          %s453 = smul.addr %s452, 4
          %s454 = scalar_lea.vmem [#allocation9], %s453
          %455 = dma.done %s451, 64
        $region68: #{tpu_custom_call.1} parent=63 // pred_fallthru
          _
      $region64: #{tpu_custom_call.1} parent=5 // pred_fallthru
        _
    $region6: #{tpu_custom_call.1} parent=1 // loop_footer
      %s21 = sadd.s32 1, %s17
    $region7: #{tpu_custom_call.1} parent=1 // loop_footer_branch
      %16 = sbr.rel target = $region3
    $region8: #{tpu_custom_call.1} parent=1 // loop_exit
      _
    %456 = vsyncpa [#allocation4], 1
    %s457 = scalar_lea.sflag [#allocation4], 1
    %458 = vsyncpa %s457, 1
    %459 = vsyncpa [#allocation7], 1
    %460 = vsyncpa [#allocation5], 1
    %s461 = scalar_lea.sflag [#allocation5], 1
    %462 = vsyncpa %s461, 1

</llo_original>
